<compile_context>
chip_gen: v7x
topology: tpu7x:2x2x1
jax: 0.10.0
libtpu: 0.0.40
codegen_flags: <defaults>
</compile_context>

<pallas_src>
import functools
import math

import jax
import jax.numpy as jnp
from jax.experimental import pallas as pl
from jax.experimental.pallas import tpu as pltpu


def _residual_block_kernel(
    x_ref,      # (1, C_in, N)     activation slab, N = batch_tile * L
    w1_ref,     # (F, K*C_in)      fused conv1 weight, bf16
    b1_ref,     # (F, 1)           f32
    w2_ref,     # (C_out, K*F)     fused conv2 weight, bf16
    b2_ref,     # (C_out, 1)       f32
    *rest,      # [w3_ref (C_out, C_in) bf16, b3_ref (C_out,1) f32,] out_ref
    kernel_size,
    dilation,
    seq_len,
    pad,
    batch_tile,
    apply_relu2,
    use_conv3,
):
    if use_conv3:
        w3_ref, b3_ref, out_ref = rest
    else:
        (out_ref,) = rest

    K, d, L = kernel_size, dilation, seq_len
    c_in = x_ref.shape[1]
    n = x_ref.shape[2]                     # batch_tile * L
    num_filters = w1_ref.shape[0]

    # Read the activation once; bf16 copy feeds the MXU, raw copy is only
    # needed for the identity residual.
    x_raw = x_ref[0]                       # (C_in, N)
    x_bf = x_raw.astype(jnp.bfloat16)

    def im2col(v, rows):
        # v: (rows, N) bf16.  Returns (K*rows, N) bf16 with tap k shifted
        # right by s = pad - k*d lanes and the first s lanes of every
        # length-L batch segment zeroed (== causal left padding + dilation).
        # Built entirely in registers: static slice + concat + VPU select,
        # no scratch stores.
        if batch_tile > 1:
            pos = jax.lax.broadcasted_iota(jnp.int32, (rows, n), 1) % L
        taps = []
        for k in range(K):
            s = pad - k * d
            if s == 0:
                taps.append(v)
            elif s >= L:
                taps.append(jnp.zeros_like(v))
            else:
                shifted = jnp.concatenate(
                    [jnp.zeros((rows, s), v.dtype), v[:, : n - s]], axis=1)
                if batch_tile > 1:
                    # zero the head of every batch segment (not just the first)
                    shifted = jnp.where(pos >= s, shifted, jnp.zeros_like(v))
                taps.append(shifted)
        return jnp.concatenate(taps, axis=0)

    # ---- conv1 (causal, dilated): ONE fused-tap bf16 matmul ---------------
    y1 = jnp.dot(w1_ref[...], im2col(x_bf, c_in),
                 preferred_element_type=jnp.float32) + b1_ref[...]
    y1 = jnp.maximum(y1, 0.0)              # ReLU; dropout_fn == identity

    # ---- conv2 (causal, dilated): ONE fused-tap bf16 matmul ---------------
    y2 = jnp.dot(w2_ref[...], im2col(y1.astype(jnp.bfloat16), num_filters),
                 preferred_element_type=jnp.float32) + b2_ref[...]
    if apply_relu2:
        y2 = jnp.maximum(y2, 0.0)
    # dropout_fn == identity

    # ---- residual path ------------------------------------------------------
    if use_conv3:
        res = jnp.dot(w3_ref[...], x_bf,
                      preferred_element_type=jnp.float32) + b3_ref[...]
    else:
        res = x_raw

    # Lane-dense store: one (C_out, batch_tile*L) slab per grid step.
    out_ref[0] = (y2 + res).astype(out_ref.dtype)


def residual_block_forward(x, params, *, kernel_size, dilation, apply_relu2,
                           use_conv3, batch_tile=None):
    """x: (B, C_in, L) in NCW layout (same as PyTorch Conv1d)."""
    w1, b1, w2, b2, w3, b3 = params
    B, C_in, L = x.shape
    F = w1.shape[0]
    C_out = w2.shape[0]
    K = kernel_size
    pad = dilation * (K - 1)

    if not use_conv3:
        assert C_in == C_out, "identity residual requires C_in == C_out"

    if batch_tile is None:
        batch_tile = math.gcd(B, 8)
        # Expose >= 2 grid iterations when possible so v7x can shard the
        # (parallel) batch axis across its two TensorCores.
        while B // batch_tile < 2 and batch_tile > 1:
            batch_tile //= 2
    assert B % batch_tile == 0
    G = B // batch_tile
    N = batch_tile * L

    # Wrapper-side layout plumbing: present activations as lane-dense
    # (C_in, batch_tile*L) slabs, one per grid step.
    x_r = (x.reshape(G, batch_tile, C_in, L)
             .transpose(0, 2, 1, 3)
             .reshape(G, C_in, N))

    # Fused tap-major weights: w_fused[o, k*C + c] = w[o, c, k].
    # bf16 operands for native MXU rate; accumulation stays f32 in-kernel.
    w1f = jnp.transpose(w1, (0, 2, 1)).reshape(F, K * C_in).astype(jnp.bfloat16)
    w2f = jnp.transpose(w2, (0, 2, 1)).reshape(C_out, K * F).astype(jnp.bfloat16)
    b1c = b1.reshape(F, 1).astype(jnp.float32)
    b2c = b2.reshape(C_out, 1).astype(jnp.float32)

    args = [x_r, w1f, b1c, w2f, b2c]
    in_specs = [
        pl.BlockSpec((1, C_in, N), lambda i: (i, 0, 0)),
        pl.BlockSpec((F, K * C_in), lambda i: (0, 0)),
        pl.BlockSpec((F, 1), lambda i: (0, 0)),
        pl.BlockSpec((C_out, K * F), lambda i: (0, 0)),
        pl.BlockSpec((C_out, 1), lambda i: (0, 0)),
    ]
    w3_bytes = 0
    if use_conv3:
        w3m = w3.reshape(C_out, C_in).astype(jnp.bfloat16)
        b3c = b3.reshape(C_out, 1).astype(jnp.float32)
        args += [w3m, b3c]
        in_specs += [
            pl.BlockSpec((C_out, C_in), lambda i: (0, 0)),
            pl.BlockSpec((C_out, 1), lambda i: (0, 0)),
        ]
        w3_bytes = 2 * (w3m.size * 2 + C_out * 4)

    # Explicit VMEM budget: double-buffered x/out slabs + (double-buffered)
    # weights/biases + in-kernel im2col/intermediate values, with headroom.
    # Keeps v5e's 16 MiB default scoped limit from choking and stays well
    # under v7x's 64 MiB physical VMEM.
    est = (2 * (C_in + C_out) * N * 4
           + 2 * ((w1f.size + w2f.size) * 2 + (F + C_out) * 4)
           + w3_bytes
           + (K * C_in + K * F) * N * 2
           + (2 * F + 3 * C_out + C_in) * N * 4)
    vmem_limit = int(min(max(4 * est, 8 << 20), 48 << 20))

    kernel = functools.partial(
        _residual_block_kernel,
        kernel_size=K, dilation=dilation, seq_len=L, pad=pad,
        batch_tile=batch_tile, apply_relu2=apply_relu2, use_conv3=use_conv3)

    out = pl.pallas_call(
        kernel,
        out_shape=jax.ShapeDtypeStruct((G, C_out, N), jnp.float32),
        grid=(G,),
        in_specs=in_specs,
        out_specs=pl.BlockSpec((1, C_out, N), lambda i: (i, 0, 0)),
        compiler_params=pltpu.CompilerParams(
            dimension_semantics=("parallel",),
            vmem_limit_bytes=vmem_limit),
    )(*args)

    return (out.reshape(G, C_out, batch_tile, L)
               .transpose(0, 2, 1, 3)
               .reshape(B, C_out, L))


# ---------------------------------------------------------------------------
# Pure-JAX reference (mirrors the PyTorch forward, with the same bf16 operand
# rounding the kernel applies at the MXU) for correctness checking.
# ---------------------------------------------------------------------------
def _bf16_round(a):
    return a.astype(jnp.bfloat16).astype(jnp.float32)


def _conv1d_causal_ref(x, w, b, dilation):
    k = w.shape[-1]
    pad = dilation * (k - 1)
    x_pad = jnp.pad(x, ((0, 0), (0, 0), (pad, 0)))
    y = jax.lax.conv_general_dilated(
        x_pad, w, window_strides=(1,), padding="VALID",
        rhs_dilation=(dilation,), dimension_numbers=("NCH", "OIH", "NCH"))
    return y + b[None, :, None]


def residual_block_ref(x, params, *, kernel_size, dilation, apply_relu2,
                       use_conv3):
    del kernel_size
    w1, b1, w2, b2, w3, b3 = params
    xq = _bf16_round(x)
    h = jax.nn.relu(_conv1d_causal_ref(xq, _bf16_round(w1), b1, dilation))
    y = _conv1d_causal_ref(_bf16_round(h), _bf16_round(w2), b2, dilation)
    if apply_relu2:
        y = jax.nn.relu(y)
    if use_conv3:
        c_out, c_in = w3.shape[0], w3.shape[1]
        res = jnp.einsum("oc,bcl->bol",
                         _bf16_round(w3.reshape(c_out, c_in)), xq)
        res = res + b3[None, :, None]
    else:
        res = x
    return y + res


def _make_params(key, input_dim, num_filters, output_dim, kernel_size,
                 use_conv3):
    ks = jax.random.split(key, 6)
    s = 0.1
    w1 = s * jax.random.normal(ks[0], (num_filters, input_dim, kernel_size),
                               jnp.float32)
    b1 = s * jax.random.normal(ks[1], (num_filters,), jnp.float32)
    w2 = s * jax.random.normal(ks[2], (output_dim, num_filters, kernel_size),
                               jnp.float32)
    b2 = s * jax.random.normal(ks[3], (output_dim,), jnp.float32)
    if use_conv3:
        w3 = s * jax.random.normal(ks[4], (output_dim, input_dim, 1),
                                   jnp.float32)
        b3 = s * jax.random.normal(ks[5], (output_dim,), jnp.float32)
    else:
        w3, b3 = None, None
    return (w1, b1, w2, b2, w3, b3)


if __name__ == "__main__":
    master = jax.random.PRNGKey(0)

    # Three _ResidualBlock configurations exercising all control-flow paths:
    #  1) dilation=1, ReLU after conv2, conv3 residual projection
    #  2) dilation=2, no ReLU after conv2 (last layer), conv3 projection
    #  3) dilation=2, ReLU after conv2, identity residual (no conv3)
    configs = [
        dict(num_filters=8, kernel_size=3, dilation_base=2, nr_blocks_below=0,
             num_layers=2, input_size=4, target_size=6),
        dict(num_filters=8, kernel_size=3, dilation_base=2, nr_blocks_below=1,
             num_layers=2, input_size=4, target_size=6),
        dict(num_filters=8, kernel_size=3, dilation_base=2, nr_blocks_below=1,
             num_layers=3, input_size=4, target_size=6),
    ]

    batch, seq_len = 2, 16
    ok = True
    for i, cfg in enumerate(configs):
        k_param, k_x = jax.random.split(jax.random.fold_in(master, i))

        input_dim = (cfg["input_size"] if cfg["nr_blocks_below"] == 0
                     else cfg["num_filters"])
        output_dim = (cfg["target_size"]
                      if cfg["nr_blocks_below"] == cfg["num_layers"] - 1
                      else cfg["num_filters"])
        dilation = cfg["dilation_base"] ** cfg["nr_blocks_below"]
        apply_relu2 = cfg["nr_blocks_below"] < cfg["num_layers"] - 1
        use_conv3 = input_dim != output_dim

        params = _make_params(k_param, input_dim, cfg["num_filters"],
                              output_dim, cfg["kernel_size"], use_conv3)
        x = jax.random.normal(k_x, (batch, input_dim, seq_len), jnp.float32)

        y = residual_block_forward(
            x, params, kernel_size=cfg["kernel_size"], dilation=dilation,
            apply_relu2=apply_relu2, use_conv3=use_conv3)
        y = jax.block_until_ready(y)

        y_ref = residual_block_ref(
            x, params, kernel_size=cfg["kernel_size"], dilation=dilation,
            apply_relu2=apply_relu2, use_conv3=use_conv3)

        assert y.shape == (batch, output_dim, seq_len), y.shape
        if not jnp.allclose(y, y_ref, atol=2e-2, rtol=2e-2):
            ok = False
            err = float(jnp.max(jnp.abs(y - y_ref)))
            print(f"config {i}: MISMATCH, max abs err = {err:.3e}")

    if ok:
        print("KERNEL_OK")
</pallas_src>

<mosaic_0001>
module attributes {stable_mosaic.version = 11 : i64} {
  func.func @_residual_block_kernel(%arg0: i32, %arg1: memref<1x4x16xf32, #tpu.memory_space<vmem>>, %arg2: memref<8x12xbf16, #tpu.memory_space<vmem>>, %arg3: memref<8x1xf32, #tpu.memory_space<vmem>>, %arg4: memref<8x24xbf16, #tpu.memory_space<vmem>>, %arg5: memref<8x1xf32, #tpu.memory_space<vmem>>, %arg6: memref<8x4xbf16, #tpu.memory_space<vmem>>, %arg7: memref<8x1xf32, #tpu.memory_space<vmem>>, %arg8: memref<1x8x16xf32, #tpu.memory_space<vmem>>) attributes {dimension_semantics = [#tpu.dimension_semantics<parallel>], iteration_bounds = array<i64: 2>, scalar_prefetch = 0 : i64, scratch_operands = 0 : i64, tpu.core_type = #tpu.core_type<tc>, window_params = [{transform_indices = @transform_0, window_bounds = array<i64: 1, 4, 16>}, {pipeline_mode = #tpu.pipeline_mode<synchronous>, transform_indices = @transform_1, window_bounds = array<i64: 8, 12>}, {pipeline_mode = #tpu.pipeline_mode<synchronous>, transform_indices = @transform_2, window_bounds = array<i64: 8, 1>}, {pipeline_mode = #tpu.pipeline_mode<synchronous>, transform_indices = @transform_3, window_bounds = array<i64: 8, 24>}, {pipeline_mode = #tpu.pipeline_mode<synchronous>, transform_indices = @transform_4, window_bounds = array<i64: 8, 1>}, {pipeline_mode = #tpu.pipeline_mode<synchronous>, transform_indices = @transform_5, window_bounds = array<i64: 8, 4>}, {pipeline_mode = #tpu.pipeline_mode<synchronous>, transform_indices = @transform_6, window_bounds = array<i64: 8, 1>}, {transform_indices = @transform_7, window_bounds = array<i64: 1, 8, 16>}]} {
    %c0 = arith.constant 0 : index
    %c0_0 = arith.constant 0 : index
    %c0_1 = arith.constant 0 : index
    %0 = vector.load %arg1[%c0, %c0_0, %c0_1] : memref<1x4x16xf32, #tpu.memory_space<vmem>>, vector<1x4x16xf32>
    %1 = vector.shape_cast %0 : vector<1x4x16xf32> to vector<4x16xf32>
    %2 = arith.truncf %1 : vector<4x16xf32> to vector<4x16xbf16>
    %c0_2 = arith.constant 0 : index
    %c0_3 = arith.constant 0 : index
    %3 = vector.load %arg2[%c0_2, %c0_3] : memref<8x12xbf16, #tpu.memory_space<vmem>>, vector<8x12xbf16>
    %cst = arith.constant 0.000000e+00 : bf16
    %4 = vector.broadcast %cst : bf16 to vector<4x2xbf16>
    %5 = vector.extract_strided_slice %2 {offsets = [0, 0], sizes = [4, 14], strides = [1, 1]} : vector<4x16xbf16> to vector<4x14xbf16>
    %6 = tpu.concatenate %4, %5 in 1 : vector<4x2xbf16>, vector<4x14xbf16> -> vector<4x16xbf16>
    %cst_4 = arith.constant 0.000000e+00 : bf16
    %7 = vector.broadcast %cst_4 : bf16 to vector<4x1xbf16>
    %8 = vector.extract_strided_slice %2 {offsets = [0, 0], sizes = [4, 15], strides = [1, 1]} : vector<4x16xbf16> to vector<4x15xbf16>
    %9 = tpu.concatenate %7, %8 in 1 : vector<4x1xbf16>, vector<4x15xbf16> -> vector<4x16xbf16>
    %10 = tpu.concatenate %6, %9, %2 in 0 : vector<4x16xbf16>, vector<4x16xbf16>, vector<4x16xbf16> -> vector<12x16xbf16>
    %cst_5 = arith.constant dense<0.000000e+00> : vector<8x16xf32>
    %11 = tpu.matmul %3, %10, %cst_5 {dimension_numbers = #tpu.dot_dimension_numbers<[1], [0], [0], [1], [0, 0, 1, 1], [], []>} : vector<8x12xbf16>, vector<12x16xbf16>, vector<8x16xf32> -> vector<8x16xf32>
    %c0_6 = arith.constant 0 : index
    %c0_7 = arith.constant 0 : index
    %12 = vector.load %arg3[%c0_6, %c0_7] : memref<8x1xf32, #tpu.memory_space<vmem>>, vector<8x1xf32>
    %13 = vector.broadcast %12 : vector<8x1xf32> to vector<8x16xf32>
    %14 = arith.addf %11, %13 : vector<8x16xf32>
    %cst_8 = arith.constant 0.000000e+00 : f32
    %15 = vector.broadcast %cst_8 : f32 to vector<8x16xf32>
    %16 = arith.maximumf %14, %15 : vector<8x16xf32>
    %c0_9 = arith.constant 0 : index
    %c0_10 = arith.constant 0 : index
    %17 = vector.load %arg4[%c0_9, %c0_10] : memref<8x24xbf16, #tpu.memory_space<vmem>>, vector<8x24xbf16>
    %18 = arith.truncf %16 : vector<8x16xf32> to vector<8x16xbf16>
    %cst_11 = arith.constant 0.000000e+00 : bf16
    %19 = vector.broadcast %cst_11 : bf16 to vector<8x2xbf16>
    %20 = vector.extract_strided_slice %18 {offsets = [0, 0], sizes = [8, 14], strides = [1, 1]} : vector<8x16xbf16> to vector<8x14xbf16>
    %21 = tpu.concatenate %19, %20 in 1 : vector<8x2xbf16>, vector<8x14xbf16> -> vector<8x16xbf16>
    %cst_12 = arith.constant 0.000000e+00 : bf16
    %22 = vector.broadcast %cst_12 : bf16 to vector<8x1xbf16>
    %23 = vector.extract_strided_slice %18 {offsets = [0, 0], sizes = [8, 15], strides = [1, 1]} : vector<8x16xbf16> to vector<8x15xbf16>
    %24 = tpu.concatenate %22, %23 in 1 : vector<8x1xbf16>, vector<8x15xbf16> -> vector<8x16xbf16>
    %25 = tpu.concatenate %21, %24, %18 in 0 : vector<8x16xbf16>, vector<8x16xbf16>, vector<8x16xbf16> -> vector<24x16xbf16>
    %cst_13 = arith.constant dense<0.000000e+00> : vector<8x16xf32>
    %26 = tpu.matmul %17, %25, %cst_13 {dimension_numbers = #tpu.dot_dimension_numbers<[1], [0], [0], [1], [0, 0, 1, 1], [], []>} : vector<8x24xbf16>, vector<24x16xbf16>, vector<8x16xf32> -> vector<8x16xf32>
    %c0_14 = arith.constant 0 : index
    %c0_15 = arith.constant 0 : index
    %27 = vector.load %arg5[%c0_14, %c0_15] : memref<8x1xf32, #tpu.memory_space<vmem>>, vector<8x1xf32>
    %28 = vector.broadcast %27 : vector<8x1xf32> to vector<8x16xf32>
    %29 = arith.addf %26, %28 : vector<8x16xf32>
    %cst_16 = arith.constant 0.000000e+00 : f32
    %30 = vector.broadcast %cst_16 : f32 to vector<8x16xf32>
    %31 = arith.maximumf %29, %30 : vector<8x16xf32>
    %c0_17 = arith.constant 0 : index
    %c0_18 = arith.constant 0 : index
    %32 = vector.load %arg6[%c0_17, %c0_18] : memref<8x4xbf16, #tpu.memory_space<vmem>>, vector<8x4xbf16>
    %cst_19 = arith.constant dense<0.000000e+00> : vector<8x16xf32>
    %33 = tpu.matmul %32, %2, %cst_19 {dimension_numbers = #tpu.dot_dimension_numbers<[1], [0], [0], [1], [0, 0, 1, 1], [], []>} : vector<8x4xbf16>, vector<4x16xbf16>, vector<8x16xf32> -> vector<8x16xf32>
    %c0_20 = arith.constant 0 : index
    %c0_21 = arith.constant 0 : index
    %34 = vector.load %arg7[%c0_20, %c0_21] : memref<8x1xf32, #tpu.memory_space<vmem>>, vector<8x1xf32>
    %35 = vector.broadcast %34 : vector<8x1xf32> to vector<8x16xf32>
    %36 = arith.addf %33, %35 : vector<8x16xf32>
    %37 = arith.addf %31, %36 : vector<8x16xf32>
    %c0_22 = arith.constant 0 : index
    %c0_23 = arith.constant 0 : index
    %c0_24 = arith.constant 0 : index
    %38 = vector.load %arg8[%c0_22, %c0_23, %c0_24] : memref<1x8x16xf32, #tpu.memory_space<vmem>>, vector<1x8x16xf32>
    %39 = vector.shape_cast %38 : vector<1x8x16xf32> to vector<8x16xf32>
    %40 = vector.shape_cast %37 : vector<8x16xf32> to vector<1x8x16xf32>
    tpu.vector_store %arg8[%c0_22, %c0_23, %c0_24], %40 {strides = array<i32>} : memref<1x8x16xf32, #tpu.memory_space<vmem>>, vector<1x8x16xf32>,
    return
  }
  func.func @transform_0(%arg0: i32) -> (i32, i32, i32) {
    %c0_i32 = arith.constant 0 : i32
    %c0_i32_0 = arith.constant 0 : i32
    %c0_i32_1 = arith.constant 0 : i32
    return %arg0, %c0_i32, %c0_i32_0 : i32, i32, i32
  }
  func.func @transform_1(%arg0: i32) -> (i32, i32) {
    %c0_i32 = arith.constant 0 : i32
    %c0_i32_0 = arith.constant 0 : i32
    %c0_i32_1 = arith.constant 0 : i32
    return %c0_i32, %c0_i32_0 : i32, i32
  }
  func.func @transform_2(%arg0: i32) -> (i32, i32) {
    %c0_i32 = arith.constant 0 : i32
    %c0_i32_0 = arith.constant 0 : i32
    %c0_i32_1 = arith.constant 0 : i32
    return %c0_i32, %c0_i32_0 : i32, i32
  }
  func.func @transform_3(%arg0: i32) -> (i32, i32) {
    %c0_i32 = arith.constant 0 : i32
    %c0_i32_0 = arith.constant 0 : i32
    %c0_i32_1 = arith.constant 0 : i32
    return %c0_i32, %c0_i32_0 : i32, i32
  }
  func.func @transform_4(%arg0: i32) -> (i32, i32) {
    %c0_i32 = arith.constant 0 : i32
    %c0_i32_0 = arith.constant 0 : i32
    %c0_i32_1 = arith.constant 0 : i32
    return %c0_i32, %c0_i32_0 : i32, i32
  }
  func.func @transform_5(%arg0: i32) -> (i32, i32) {
    %c0_i32 = arith.constant 0 : i32
    %c0_i32_0 = arith.constant 0 : i32
    %c0_i32_1 = arith.constant 0 : i32
    return %c0_i32, %c0_i32_0 : i32, i32
  }
  func.func @transform_6(%arg0: i32) -> (i32, i32) {
    %c0_i32 = arith.constant 0 : i32
    %c0_i32_0 = arith.constant 0 : i32
    %c0_i32_1 = arith.constant 0 : i32
    return %c0_i32, %c0_i32_0 : i32, i32
  }
  func.func @transform_7(%arg0: i32) -> (i32, i32, i32) {
    %c0_i32 = arith.constant 0 : i32
    %c0_i32_0 = arith.constant 0 : i32
    %c0_i32_1 = arith.constant 0 : i32
    return %arg0, %c0_i32, %c0_i32_0 : i32, i32, i32
  }
}

</mosaic_0001>

<llo_original>
// kernel: tpu_custom_call.1
$region0: #{tpu_custom_call.1}
  #allocation0 [shape = 'u32[]', space=smem, size = 0x4, offset = 0x4, fixed_abs, tag = 'smem constant byte address 0x4 - core index']
  #allocation1 [shape = 'u32[144,128]{1,0:T(1,128)}', space=vmem, size = 0x12000, scoped, tag = 'internal scratch']
  %s0 = inlined_call_operand.vmem [shape: f32[2,4,16], index: 0, kind: input, shape index: {}]
  %s1 = inlined_call_operand.vmem [shape: bf16[8,12], index: 1, kind: input, shape index: {}]
  %s2 = inlined_call_operand.vmem [shape: f32[8,1], index: 2, kind: input, shape index: {}]
  %s3 = inlined_call_operand.vmem [shape: bf16[8,24], index: 3, kind: input, shape index: {}]
  %s4 = inlined_call_operand.vmem [shape: f32[8,1], index: 4, kind: input, shape index: {}]
  %s5 = inlined_call_operand.vmem [shape: bf16[8,4], index: 5, kind: input, shape index: {}]
  %s6 = inlined_call_operand.vmem [shape: f32[8,1], index: 6, kind: input, shape index: {}]
  %s7 = inlined_call_operand.hbm [shape: f32[2,8,16], index: 7, kind: output, shape index: {}]
  %s8 = sld [smem:[#allocation0]]
  $region61: #{tpu_custom_call.1} parent=0
    _
  %s10 = ssub.s32 1, %s8
  %s11 = scalar_select 0, %s10, %s8
  $region1: #{tpu_custom_call.1} parent=0
    #allocation2 [shape = 'u8[8192]{0}', space=vmem, size = 0x2000, scoped, tag = 'output window, operand 0']
    #allocation3 [shape = 's32[2]{0}', space=sflag, size = 0x8, scoped, tag = 'scoped memory for tpu_custom_call.1']
    %12 = vsyncpa [#allocation3], 0
    %s13 = scalar_lea.sflag [#allocation3], 1
    %14 = vsyncpa %s13, 0
    loop: start=0, step=1, limit=4
    $region2: #{tpu_custom_call.1} parent=1 // loop_pre_header
      _
    $region3: #{tpu_custom_call.1} parent=1 // loop_header
      %s16 = sphi 0, %s20
      %p17 = scmp.ge.s32.totalorder %s16, 4
      %s26 = sphi 0, %s28
      %s29 = sphi 0, %s26
      %s30 = sphi 0, %s29
      %s46 = sphi 0, %s30
      %s50 = sphi 0, %s50
      %s52 = sphi 0, %s50
      %s53 = sphi 0, %s52
      %s67 = sphi 0, %s53
      %s71 = sphi 0, %s71
      %s73 = sphi 0, %s71
      %s74 = sphi 0, %s73
      %s88 = sphi 0, %s74
      %s92 = sphi 0, %s92
      %s94 = sphi 0, %s92
      %s95 = sphi 0, %s94
      %s109 = sphi 0, %s95
      %s113 = sphi 0, %s113
      %s115 = sphi 0, %s113
      %s116 = sphi 0, %s115
      %s130 = sphi 0, %s116
      %s134 = sphi 0, %s134
      %s136 = sphi 0, %s134
      %s137 = sphi 0, %s136
      %s151 = sphi 0, %s137
      %s155 = sphi 0, %s155
      %s157 = sphi 0, %s155
      %s158 = sphi 0, %s157
      %s172 = sphi 0, %s158
      %s178 = sphi 0, %s180
      %s181 = sphi 0, %s178
      %s182 = sphi 0, %s181
      %s198 = sphi 0, %s182
    $region4: #{tpu_custom_call.1} parent=1 // loop_header_branch
      %19 = sbr.rel (%p17) target = $region8
    $region5: #{tpu_custom_call.1} parent=1 // loop_body
      %s21 = ssub.s32 %s16, 1
      %s22 = ssub.s32 %s16, 2
      %s23 = sadd.s32 %s16, 1
      %s24 = ssub.s32 %s16, %s23
      %p25 = scmp.eq.s32.totalorder %s24, 0
      %s27 = sadd.s32 %s26, 1
      %s28 = scalar_select %p25, %s26, %s27
      %p31 = pneg %p25
      %p32 = scmp.eq.s32.totalorder %s16, 1
      %p33 = por %p31, %p32
      %p34 = scmp.ne.s32.totalorder %s26, %s29
      %p35 = scmp.eq.s32.totalorder %s16, 0
      %p36 = por %p34, %p35
      %p37 = scmp.ne.s32.totalorder %s26, %s29
      %p38 = scmp.eq.s32.totalorder %s21, 1
      %p39 = por %p37, %p38
      %p40 = scmp.ne.s32.totalorder %s29, %s30
      %p41 = scmp.eq.s32.totalorder %s21, 0
      %p42 = por %p40, %p41
      %p43 = scmp.ne.s32.totalorder %s29, %s30
      %p44 = scmp.eq.s32.totalorder %s22, 1
      %p45 = por %p43, %p44
      %p47 = scmp.ne.s32.totalorder %s30, %s46
      %p48 = scmp.eq.s32.totalorder %s22, 0
      %p49 = por %p47, %p48
      %s51 = sadd.s32 %s50, 1
      %p54 = scmp.eq.s32.totalorder %s16, 1
      %p55 = scmp.ne.s32.totalorder %s50, %s52
      %p56 = scmp.eq.s32.totalorder %s16, 0
      %p57 = por %p55, %p56
      %p58 = scmp.ne.s32.totalorder %s50, %s52
      %p59 = scmp.eq.s32.totalorder %s21, 1
      %p60 = por %p58, %p59
      %p61 = scmp.ne.s32.totalorder %s52, %s53
      %p62 = scmp.eq.s32.totalorder %s21, 0
      %p63 = por %p61, %p62
      %p64 = scmp.ne.s32.totalorder %s52, %s53
      %p65 = scmp.eq.s32.totalorder %s22, 1
      %p66 = por %p64, %p65
      %p68 = scmp.ne.s32.totalorder %s53, %s67
      %p69 = scmp.eq.s32.totalorder %s22, 0
      %p70 = por %p68, %p69
      %s72 = sadd.s32 %s71, 1
      %p75 = scmp.eq.s32.totalorder %s16, 1
      %p76 = scmp.ne.s32.totalorder %s71, %s73
      %p77 = scmp.eq.s32.totalorder %s16, 0
      %p78 = por %p76, %p77
      %p79 = scmp.ne.s32.totalorder %s71, %s73
      %p80 = scmp.eq.s32.totalorder %s21, 1
      %p81 = por %p79, %p80
      %p82 = scmp.ne.s32.totalorder %s73, %s74
      %p83 = scmp.eq.s32.totalorder %s21, 0
      %p84 = por %p82, %p83
      %p85 = scmp.ne.s32.totalorder %s73, %s74
      %p86 = scmp.eq.s32.totalorder %s22, 1
      %p87 = por %p85, %p86
      %p89 = scmp.ne.s32.totalorder %s74, %s88
      %p90 = scmp.eq.s32.totalorder %s22, 0
      %p91 = por %p89, %p90
      %s93 = sadd.s32 %s92, 1
      %p96 = scmp.eq.s32.totalorder %s16, 1
      %p97 = scmp.ne.s32.totalorder %s92, %s94
      %p98 = scmp.eq.s32.totalorder %s16, 0
      %p99 = por %p97, %p98
      %p100 = scmp.ne.s32.totalorder %s92, %s94
      %p101 = scmp.eq.s32.totalorder %s21, 1
      %p102 = por %p100, %p101
      %p103 = scmp.ne.s32.totalorder %s94, %s95
      %p104 = scmp.eq.s32.totalorder %s21, 0
      %p105 = por %p103, %p104
      %p106 = scmp.ne.s32.totalorder %s94, %s95
      %p107 = scmp.eq.s32.totalorder %s22, 1
      %p108 = por %p106, %p107
      %p110 = scmp.ne.s32.totalorder %s95, %s109
      %p111 = scmp.eq.s32.totalorder %s22, 0
      %p112 = por %p110, %p111
      %s114 = sadd.s32 %s113, 1
      %p117 = scmp.eq.s32.totalorder %s16, 1
      %p118 = scmp.ne.s32.totalorder %s113, %s115
      %p119 = scmp.eq.s32.totalorder %s16, 0
      %p120 = por %p118, %p119
      %p121 = scmp.ne.s32.totalorder %s113, %s115
      %p122 = scmp.eq.s32.totalorder %s21, 1
      %p123 = por %p121, %p122
      %p124 = scmp.ne.s32.totalorder %s115, %s116
      %p125 = scmp.eq.s32.totalorder %s21, 0
      %p126 = por %p124, %p125
      %p127 = scmp.ne.s32.totalorder %s115, %s116
      %p128 = scmp.eq.s32.totalorder %s22, 1
      %p129 = por %p127, %p128
      %p131 = scmp.ne.s32.totalorder %s116, %s130
      %p132 = scmp.eq.s32.totalorder %s22, 0
      %p133 = por %p131, %p132
      %s135 = sadd.s32 %s134, 1
      %p138 = scmp.eq.s32.totalorder %s16, 1
      %p139 = scmp.ne.s32.totalorder %s134, %s136
      %p140 = scmp.eq.s32.totalorder %s16, 0
      %p141 = por %p139, %p140
      %p142 = scmp.ne.s32.totalorder %s134, %s136
      %p143 = scmp.eq.s32.totalorder %s21, 1
      %p144 = por %p142, %p143
      %p145 = scmp.ne.s32.totalorder %s136, %s137
      %p146 = scmp.eq.s32.totalorder %s21, 0
      %p147 = por %p145, %p146
      %p148 = scmp.ne.s32.totalorder %s136, %s137
      %p149 = scmp.eq.s32.totalorder %s22, 1
      %p150 = por %p148, %p149
      %p152 = scmp.ne.s32.totalorder %s137, %s151
      %p153 = scmp.eq.s32.totalorder %s22, 0
      %p154 = por %p152, %p153
      %s156 = sadd.s32 %s155, 1
      %p159 = scmp.eq.s32.totalorder %s16, 1
      %p160 = scmp.ne.s32.totalorder %s155, %s157
      %p161 = scmp.eq.s32.totalorder %s16, 0
      %p162 = por %p160, %p161
      %p163 = scmp.ne.s32.totalorder %s155, %s157
      %p164 = scmp.eq.s32.totalorder %s21, 1
      %p165 = por %p163, %p164
      %p166 = scmp.ne.s32.totalorder %s157, %s158
      %p167 = scmp.eq.s32.totalorder %s21, 0
      %p168 = por %p166, %p167
      %p169 = scmp.ne.s32.totalorder %s157, %s158
      %p170 = scmp.eq.s32.totalorder %s22, 1
      %p171 = por %p169, %p170
      %p173 = scmp.ne.s32.totalorder %s158, %s172
      %p174 = scmp.eq.s32.totalorder %s22, 0
      %p175 = por %p173, %p174
      %s176 = ssub.s32 %s16, %s23
      %p177 = scmp.eq.s32.totalorder %s176, 0
      %s179 = sadd.s32 %s178, 1
      %s180 = scalar_select %p177, %s178, %s179
      %p183 = pneg %p177
      %p184 = scmp.eq.s32.totalorder %s16, 1
      %p185 = por %p183, %p184
      %p186 = scmp.ne.s32.totalorder %s178, %s181
      %p187 = scmp.eq.s32.totalorder %s16, 0
      %p188 = por %p186, %p187
      %p189 = scmp.ne.s32.totalorder %s178, %s181
      %p190 = scmp.eq.s32.totalorder %s21, 1
      %p191 = por %p189, %p190
      %p192 = scmp.ne.s32.totalorder %s181, %s182
      %p193 = scmp.eq.s32.totalorder %s21, 0
      %p194 = por %p192, %p193
      %p195 = scmp.ne.s32.totalorder %s181, %s182
      %p196 = scmp.eq.s32.totalorder %s22, 1
      %p197 = por %p195, %p196
      %p199 = scmp.ne.s32.totalorder %s182, %s198
      %p200 = scmp.eq.s32.totalorder %s22, 0
      %p201 = por %p199, %p200
      %p202 = scmp.le.s32.totalorder 1, %s16
      %p203 = scmp.lt.s32.totalorder %s16, 3
      %p204 = pnand %p202, %p203
      %p205 = pneg %p204
      // Predicated region
      $region9: #{tpu_custom_call.1} parent=5 // pred_check
        _
      $region10: #{tpu_custom_call.1} parent=5 // pred_check_branch
        %207 = sbr.rel (%p204) target = $region12
      $region11: #{tpu_custom_call.1} parent=5 // pred_region
        %s208 = ssub.s32 %s16, 1
        // Predicated region
        $region13: #{tpu_custom_call.1} parent=11 // pred_check
          %p209 = pneg %p63
        $region14: #{tpu_custom_call.1} parent=11 // pred_check_branch
          %211 = sbr.rel (%p209) target = $region16
        $region15: #{tpu_custom_call.1} parent=11 // pred_region
          _
        $region16: #{tpu_custom_call.1} parent=11 // pred_fallthru
          _
        // Predicated region
        $region17: #{tpu_custom_call.1} parent=11 // pred_check
          %p212 = pneg %p84
        $region18: #{tpu_custom_call.1} parent=11 // pred_check_branch
          %214 = sbr.rel (%p212) target = $region20
        $region19: #{tpu_custom_call.1} parent=11 // pred_region
          _
        $region20: #{tpu_custom_call.1} parent=11 // pred_fallthru
          _
        // Predicated region
        $region21: #{tpu_custom_call.1} parent=11 // pred_check
          %p215 = pneg %p105
        $region22: #{tpu_custom_call.1} parent=11 // pred_check_branch
          %217 = sbr.rel (%p215) target = $region24
        $region23: #{tpu_custom_call.1} parent=11 // pred_region
          _
        $region24: #{tpu_custom_call.1} parent=11 // pred_fallthru
          _
        // Predicated region
        $region25: #{tpu_custom_call.1} parent=11 // pred_check
          %p218 = pneg %p126
        $region26: #{tpu_custom_call.1} parent=11 // pred_check_branch
          %220 = sbr.rel (%p218) target = $region28
        $region27: #{tpu_custom_call.1} parent=11 // pred_region
          _
        $region28: #{tpu_custom_call.1} parent=11 // pred_fallthru
          _
        // Predicated region
        $region29: #{tpu_custom_call.1} parent=11 // pred_check
          %p221 = pneg %p147
        $region30: #{tpu_custom_call.1} parent=11 // pred_check_branch
          %223 = sbr.rel (%p221) target = $region32
        $region31: #{tpu_custom_call.1} parent=11 // pred_region
          _
        $region32: #{tpu_custom_call.1} parent=11 // pred_fallthru
          _
        // Predicated region
        $region33: #{tpu_custom_call.1} parent=11 // pred_check
          %p224 = pneg %p168
        $region34: #{tpu_custom_call.1} parent=11 // pred_check_branch
          %226 = sbr.rel (%p224) target = $region36
        $region35: #{tpu_custom_call.1} parent=11 // pred_region
          _
        $region36: #{tpu_custom_call.1} parent=11 // pred_fallthru
          _
      $region12: #{tpu_custom_call.1} parent=5 // pred_fallthru
        _
      %p227 = scmp.lt.s32.totalorder %s16, 2
      // Predicated region
      $region37: #{tpu_custom_call.1} parent=5 // pred_check
        %p228 = pneg %p227
      $region38: #{tpu_custom_call.1} parent=5 // pred_check_branch
        %230 = sbr.rel (%p228) target = $region40
      $region39: #{tpu_custom_call.1} parent=5 // pred_region
        // Predicated region
        $region41: #{tpu_custom_call.1} parent=39 // pred_check
          %p231 = pneg %p36
        $region42: #{tpu_custom_call.1} parent=39 // pred_check_branch
          %233 = sbr.rel (%p231) target = $region44
        $region43: #{tpu_custom_call.1} parent=39 // pred_region
          %p234 = scmp.lt.s32.totalorder %s16, 1
          %s235 = scalar_select %p234, %s16, 1
          %s236 = smul.addr %s235, 4
          %s237 = scalar_lea.vmem %s0, %s236
        $region44: #{tpu_custom_call.1} parent=39 // pred_fallthru
          _
      $region40: #{tpu_custom_call.1} parent=5 // pred_fallthru
        _
      %p238 = scmp.le.s32.totalorder 1, %s16
      %p239 = scmp.lt.s32.totalorder %s16, 3
      %p240 = pnand %p238, %p239
      %p241 = pneg %p240
      // Predicated region
      $region45: #{tpu_custom_call.1} parent=5 // pred_check
        _
      $region46: #{tpu_custom_call.1} parent=5 // pred_check_branch
        %243 = sbr.rel (%p240) target = $region48
      $region47: #{tpu_custom_call.1} parent=5 // pred_region
        %s244 = ssub.s32 %s16, 1
        %p245 = scmp.lt.s32.totalorder %s21, 1
        %s246 = scalar_select %p245, %s21, 1
        %s247 = smul.addr %s246, 4
        %s248 = scalar_lea.vmem %s0, %s247
        %p249 = pneg %p42
        %p250 = pneg %p39
        %p251 = pneg %p63
        %p252 = pneg %p60
        %p253 = pneg %p84
        %p254 = pneg %p81
        %p255 = pneg %p105
        %p256 = pneg %p102
        %p257 = pneg %p126
        %p258 = pneg %p123
        %p259 = pneg %p147
        %p260 = pneg %p144
        %p261 = pneg %p168
        %p262 = pneg %p165
        %p263 = pneg %p194
        %p264 = pneg %p191
        %s265 = sand.u32 %s181, 1
        %s266 = scalar_lea.sflag [#allocation3], %s265
        %s267 = sand.u32 %s181, 1
        %s268 = smul.addr %s267, 8
        %s269 = scalar_lea.vmem [#allocation2], %s268
        %p270 = scmp.lt.s32.totalorder %s21, 1
        %s271 = scalar_select %p270, %s21, 1
        %s272 = smul.addr %s271, 4
        %s273 = scalar_lea.vmem %s0, %s272
        %v275 = vld [vmem:[%s273] sm:$0xf]
        %v276 = vpack.c.bf16 %v275, %v275
        %v277 = vld [vmem:[%s1] sm:$0xf]
        %279 = vrot.lane.b32.xlu0 %v276, 2
        %v280 = vpop.permute.xlu0 %279
        %vm281 = vcmask 15360
        %v284 = vsel %vm281, 0, %v280
        %285 = vrot.lane.b32.xlu0 %v276, 1
        %v286 = vpop.permute.xlu0 %285
        %vm287 = vcmask 7168
        %v289 = vsel %vm287, 0, %v286
        %v291 = vrot.slane %v289, 6
        %v292 = vrot.slane %v276, 4
        %vm293 = vcmask 1041408
        %v295 = vsel %vm293, %v284, %v291
        %vm296 = vcmask 1043456
        %v298 = vsel %vm296, %v295, %v292
        %v299 = vld [vmem:[%s2] sm:$0xff]
        %301 = vset.pattern.permute.xlu0 0
        %302 = vperm.xlu0 %301, %v299
        %v303 = vpop.permute.xlu0 %302
        %vm305 = vcmask 97280
        %v307 = vsel %vm305, %v277, 0
        %vm309 = vcmask 1045504
        %v310 = vsel %vm309, %v298, 0
        %312 = vmatprep.subr.bf16.mxu0 0
        %313 = vmatpush1.bf16.msra.mxu0 %v310
        %314 = vmatprep.subr.bf16.mxu0 0
        %315 = vmatpush1.bf16.msra.mxu0 0
        %316 = vmatprep.subr.bf16.mxu0 0
        %317 = vmatpush1.bf16.msra.mxu0 0
        %318 = vmatprep.subr.bf16.mxu0 0
        %319 = vmatpush1.bf16.msra.mxu0 0
        %320 = vmatprep.subr.bf16.mxu0 0
        %321 = vmatpush1.bf16.msra.mxu0 0
        %322 = vmatprep.subr.bf16.mxu0 0
        %323 = vmatpush1.bf16.msra.mxu0 0
        %324 = vmatprep.subr.bf16.mxu0 0
        %325 = vmatpush1.bf16.msra.mxu0 0
        %326 = vmatprep.subr.bf16.mxu0 0
        %327 = vmatpush1.bf16.msra.mxu0 0
        %328 = vmatprep.subr.bf16.mxu0 0
        %329 = vmatpush1.bf16.msra.mxu0 0
        %330 = vmatprep.subr.bf16.mxu0 0
        %331 = vmatpush1.bf16.msra.mxu0 0
        %332 = vmatprep.subr.bf16.mxu0 0
        %333 = vmatpush1.bf16.msra.mxu0 0
        %334 = vmatprep.subr.bf16.mxu0 0
        %335 = vmatpush1.bf16.msra.mxu0 0
        %336 = vmatprep.subr.bf16.mxu0 0
        %337 = vmatpush1.bf16.msra.mxu0 0
        %338 = vmatprep.subr.bf16.mxu0 0
        %339 = vmatpush1.bf16.msra.mxu0 0
        %340 = vmatprep.subr.bf16.mxu0 0
        %341 = vmatpush1.bf16.msra.mxu0 0
        %342 = vmatprep.subr.bf16.mxu0 0
        %343 = vmatpush1.bf16.msra.mxu0 0
        %344 = vmatprep.mubr.bf16.mxu0 0
        %345 = vmatmul.mubr.bf16.gmra.mrb[0].mxu0 %v307
        %v346 = vpop.f32.mrb[0].mxu0
        %v347 = vadd.f32 %v303, %v346
        %v348 = vpop.f32.mrb[0].mxu0
        %v349 = vpop.f32.mrb[0].mxu0
        %v350 = vpop.f32.mrb[0].mxu0
        %351 = vdwg.mxu0
        %v352 = vmax.f32 %v347, 0.0
        %v353 = vld [vmem:[%s3] sm:$0xf]
        %v354 = vpack.c.bf16 %v352, %v352
        %356 = vrot.lane.b32.xlu0 %v354, 2
        %v357 = vpop.permute.xlu0 %356
        %v359 = vsel %vm281, 0, %v357
        %360 = vrot.lane.b32.xlu0 %v354, 1
        %v361 = vpop.permute.xlu0 %360
        %v363 = vsel %vm287, 0, %v361
        %v365 = vrot.slane %v363, 4
        %v367 = vsel %vm296, %v359, %v365
        %v369 = vld [vmem:[%s4] sm:$0xff]
        %371 = vset.pattern.permute.xlu0 0
        %372 = vperm.xlu0 %371, %v369
        %v373 = vpop.permute.xlu0 %372
        %vm375 = vcmask 195584
        %v377 = vsel %vm375, %v353, 0
        %v380 = vsel %vm296, %v354, 0
        %382 = vmatprep.subr.bf16.mxu0 0
        %383 = vmatpush1.bf16.msra.mxu0 %v367
        %384 = vmatprep.subr.bf16.mxu0 0
        %385 = vmatpush1.bf16.msra.mxu0 %v380
        %386 = vmatprep.subr.bf16.mxu0 0
        %387 = vmatpush1.bf16.msra.mxu0 0
        %388 = vmatprep.subr.bf16.mxu0 0
        %389 = vmatpush1.bf16.msra.mxu0 0
        %390 = vmatprep.subr.bf16.mxu0 0
        %391 = vmatpush1.bf16.msra.mxu0 0
        %392 = vmatprep.subr.bf16.mxu0 0
        %393 = vmatpush1.bf16.msra.mxu0 0
        %394 = vmatprep.subr.bf16.mxu0 0
        %395 = vmatpush1.bf16.msra.mxu0 0
        %396 = vmatprep.subr.bf16.mxu0 0
        %397 = vmatpush1.bf16.msra.mxu0 0
        %398 = vmatprep.subr.bf16.mxu0 0
        %399 = vmatpush1.bf16.msra.mxu0 0
        %400 = vmatprep.subr.bf16.mxu0 0
        %401 = vmatpush1.bf16.msra.mxu0 0
        %402 = vmatprep.subr.bf16.mxu0 0
        %403 = vmatpush1.bf16.msra.mxu0 0
        %404 = vmatprep.subr.bf16.mxu0 0
        %405 = vmatpush1.bf16.msra.mxu0 0
        %406 = vmatprep.subr.bf16.mxu0 0
        %407 = vmatpush1.bf16.msra.mxu0 0
        %408 = vmatprep.subr.bf16.mxu0 0
        %409 = vmatpush1.bf16.msra.mxu0 0
        %410 = vmatprep.subr.bf16.mxu0 0
        %411 = vmatpush1.bf16.msra.mxu0 0
        %412 = vmatprep.subr.bf16.mxu0 0
        %413 = vmatpush1.bf16.msra.mxu0 0
        %414 = vmatprep.mubr.bf16.mxu0 0
        %415 = vmatmul.mubr.bf16.gmra.mrb[0].mxu0 %v377
        %v416 = vpop.f32.mrb[0].mxu0
        %v417 = vadd.f32 %v373, %v416
        %v418 = vpop.f32.mrb[0].mxu0
        %v419 = vpop.f32.mrb[0].mxu0
        %v420 = vpop.f32.mrb[0].mxu0
        %421 = vdwg.mxu0
        %v422 = vmax.f32 %v417, 0.0
        %v423 = vld [vmem:[%s5] sm:$0xf]
        %v424 = vld [vmem:[%s6] sm:$0xff]
        %426 = vset.pattern.permute.xlu0 0
        %427 = vperm.xlu0 %426, %v424
        %v428 = vpop.permute.xlu0 %427
        %vm430 = vcmask 31744
        %v432 = vsel %vm430, %v423, 0
        %v435 = vsel %vm293, %v276, 0
        %437 = vmatprep.subr.bf16.mxu0 0
        %438 = vmatpush1.bf16.msra.mxu0 %v435
        %439 = vmatprep.subr.bf16.mxu0 0
        %440 = vmatpush1.bf16.msra.mxu0 0
        %441 = vmatprep.subr.bf16.mxu0 0
        %442 = vmatpush1.bf16.msra.mxu0 0
        %443 = vmatprep.subr.bf16.mxu0 0
        %444 = vmatpush1.bf16.msra.mxu0 0
        %445 = vmatprep.subr.bf16.mxu0 0
        %446 = vmatpush1.bf16.msra.mxu0 0
        %447 = vmatprep.subr.bf16.mxu0 0
        %448 = vmatpush1.bf16.msra.mxu0 0
        %449 = vmatprep.subr.bf16.mxu0 0
        %450 = vmatpush1.bf16.msra.mxu0 0
        %451 = vmatprep.subr.bf16.mxu0 0
        %452 = vmatpush1.bf16.msra.mxu0 0
        %453 = vmatprep.subr.bf16.mxu0 0
        %454 = vmatpush1.bf16.msra.mxu0 0
        %455 = vmatprep.subr.bf16.mxu0 0
        %456 = vmatpush1.bf16.msra.mxu0 0
        %457 = vmatprep.subr.bf16.mxu0 0
        %458 = vmatpush1.bf16.msra.mxu0 0
        %459 = vmatprep.subr.bf16.mxu0 0
        %460 = vmatpush1.bf16.msra.mxu0 0
        %461 = vmatprep.subr.bf16.mxu0 0
        %462 = vmatpush1.bf16.msra.mxu0 0
        %463 = vmatprep.subr.bf16.mxu0 0
        %464 = vmatpush1.bf16.msra.mxu0 0
        %465 = vmatprep.subr.bf16.mxu0 0
        %466 = vmatpush1.bf16.msra.mxu0 0
        %467 = vmatprep.subr.bf16.mxu0 0
        %468 = vmatpush1.bf16.msra.mxu0 0
        %469 = vmatprep.mubr.bf16.mxu0 0
        %470 = vmatmul.mubr.bf16.gmra.mrb[0].mxu0 %v432
        %v471 = vpop.f32.mrb[0].mxu0
        %v472 = vadd.f32 %v428, %v471
        %v473 = vpop.f32.mrb[0].mxu0
        %v474 = vpop.f32.mrb[0].mxu0
        %v475 = vpop.f32.mrb[0].mxu0
        %476 = vdwg.mxu0
        %v477 = vadd.f32 %v422, %v472
        %vm478 = vcmask 130048
        %479 = vst.msk [vmem:[%s269] sm:$0xff] %vm478, %v477
        %s480 = sand.u32 %s181, 1
        %s481 = scalar_lea.sflag [#allocation3], %s480
        %s482 = sand.u32 %s181, 1
        %s483 = smul.addr %s482, 8
        %s484 = scalar_lea.vmem [#allocation2], %s483
        // Predicated region
        $region49: #{tpu_custom_call.1} parent=47 // pred_check
          %p485 = pneg %p191
        $region50: #{tpu_custom_call.1} parent=47 // pred_check_branch
          %487 = sbr.rel (%p485) target = $region52
        $region51: #{tpu_custom_call.1} parent=47 // pred_region
          %s489 = ssub.s32 128, 128
          %490 = vsyncadd %s481, %s489
          %s491 = smul.addr %s21, 128
          %s492 = scalar_lea.hbm %s7, %s491
          %s494 = sshll.u32 %s484, 4
          %s495 = int_to_ptr.vmem [resolvable:$true] %s494
          %497 = dma.vmem_to_hbm [thread:$0]  %s495, 128, %s492, %s481
        $region52: #{tpu_custom_call.1} parent=47 // pred_fallthru
          _
      $region48: #{tpu_custom_call.1} parent=5 // pred_fallthru
        _
      %p498 = scmp.le.s32.totalorder 2, %s16
      // Predicated region
      $region53: #{tpu_custom_call.1} parent=5 // pred_check
        %p499 = pneg %p498
      $region54: #{tpu_custom_call.1} parent=5 // pred_check_branch
        %501 = sbr.rel (%p499) target = $region56
      $region55: #{tpu_custom_call.1} parent=5 // pred_region
        %s502 = ssub.s32 %s16, 2
        // Predicated region
        $region57: #{tpu_custom_call.1} parent=55 // pred_check
          %p503 = pneg %p197
        $region58: #{tpu_custom_call.1} parent=55 // pred_check_branch
          %505 = sbr.rel (%p503) target = $region60
        $region59: #{tpu_custom_call.1} parent=55 // pred_region
          %s506 = sand.u32 %s182, 1
          %s507 = scalar_lea.sflag [#allocation3], %s506
          %s508 = sand.u32 %s182, 1
          %s509 = smul.addr %s508, 8
          %s510 = scalar_lea.vmem [#allocation2], %s509
          %511 = dma.done %s507, 128
        $region60: #{tpu_custom_call.1} parent=55 // pred_fallthru
          _
      $region56: #{tpu_custom_call.1} parent=5 // pred_fallthru
        _
    $region6: #{tpu_custom_call.1} parent=1 // loop_footer
      %s20 = sadd.s32 1, %s16
    $region7: #{tpu_custom_call.1} parent=1 // loop_footer_branch
      %15 = sbr.rel target = $region3
    $region8: #{tpu_custom_call.1} parent=1 // loop_exit
      _
    %512 = vsyncpa [#allocation3], 1
    %s513 = scalar_lea.sflag [#allocation3], 1
    %514 = vsyncpa %s513, 1

</llo_original>
